<compile_context>
chip_gen: v7x
topology: tpu7x:2x2x1
jax: 0.10.0
libtpu: 0.0.40
codegen_flags: <defaults>
</compile_context>

<pallas_src>
import math

import jax
import jax.numpy as jnp
from jax import lax
from jax.experimental import pallas as pl
from jax.experimental.pallas import tpu as pltpu

_LANE = 128
_SUBLANE = 8
_INV_SQRT2 = 0.7071067811865476


def _round_up(x, m):
    return (x + m - 1) // m * m


def _ceil_div(a, b):
    return (a + b - 1) // b


def _gelu_exact(v):
    # PyTorch nn.GELU() default = exact (erf-based) GELU.
    return 0.5 * v * (1.0 + lax.erf(v * _INV_SQRT2))


def _gelu_tanh(v):
    # tanh approximation: transcendental goes to the EUP slot (co-issues with MXU).
    return jax.nn.gelu(v, approximate=True)


# ----------------------------------------------------------------------------- #
# Hardware-aware budgets / feature detection
# ----------------------------------------------------------------------------- #

def _vmem_budget_bytes():
    """Generation-aware scoped-VMEM budget: capacity minus headroom, capped."""
    cap = 64 << 20  # conservative default (v7x-sized per-TC VMEM) if query fails
    try:
        info_cap = int(pltpu.get_tpu_info().vmem_capacity_bytes)
        if info_cap > 0:
            cap = info_cap
    except Exception:
        pass
    # Leave ~8 MiB for Mosaic internal scratch/semaphores; never request more than
    # ~100 MiB even on 128 MiB parts (v5e/v6e).
    return min(cap - (8 << 20), 100 << 20)


_BUFFERED_OK = None


def _buffered_single_ok():
    """One-time probe: does this jax/Mosaic accept pipeline_mode=pl.Buffered(1)?"""
    global _BUFFERED_OK
    if _BUFFERED_OK is not None:
        return _BUFFERED_OK
    if not hasattr(pl, "Buffered"):
        _BUFFERED_OK = False
        return _BUFFERED_OK
    try:
        def _probe_kernel(x_ref, o_ref):
            o_ref[...] = x_ref[...]

        probe = pl.pallas_call(
            _probe_kernel,
            out_shape=jax.ShapeDtypeStruct((_SUBLANE, _LANE), jnp.float32),
            grid_spec=pltpu.PrefetchScalarGridSpec(
                num_scalar_prefetch=0,
                grid=(1,),
                in_specs=[pl.BlockSpec((_SUBLANE, _LANE), lambda i: (0, 0),
                                       pipeline_mode=pl.Buffered(1))],
                out_specs=pl.BlockSpec((_SUBLANE, _LANE), lambda i: (0, 0)),
            ),
        )
        jax.jit(probe).lower(
            jax.ShapeDtypeStruct((_SUBLANE, _LANE), jnp.float32)).compile()
        _BUFFERED_OK = True
    except Exception:
        _BUFFERED_OK = False
    return _BUFFERED_OK


# ----------------------------------------------------------------------------- #
# Kernels
# ----------------------------------------------------------------------------- #

def _make_resident_kernel(approximate):
    gelu = _gelu_tanh if approximate else _gelu_exact

    def kernel(x_ref, w1_ref, b1_ref, w2_ref, b2_ref, o_ref):
        # x_ref:  (TN, Dp) token tile; w*_ref: (Dp, Dp) pre-transposed (in,out);
        # b*_ref: (1, Dp) f32.
        x = x_ref[...]
        h = jnp.dot(x.astype(w1_ref.dtype), w1_ref[...],
                    preferred_element_type=jnp.float32)
        h = gelu(h + b1_ref[...])
        y = jnp.dot(h.astype(w2_ref.dtype), w2_ref[...],
                    preferred_element_type=jnp.float32)
        # single (TN, Dp) store -> one vst stream (friendly to v5e's lone vst slot)
        o_ref[...] = gelu(x.astype(jnp.float32) + y + b2_ref[...]).astype(o_ref.dtype)

    return kernel


def _make_stream_kernel(approximate, with_residual):
    """K-tiled matmul with fused bias(+residual)+GELU epilogue."""
    gelu = _gelu_tanh if approximate else _gelu_exact

    if with_residual:
        def kernel(x_ref, w_ref, b_ref, r_ref, o_ref, acc_ref):
            @pl.when(pl.program_id(2) == 0)
            def _():
                acc_ref[...] = jnp.zeros_like(acc_ref)

            acc_ref[...] += jnp.dot(x_ref[...].astype(w_ref.dtype), w_ref[...],
                                    preferred_element_type=jnp.float32)

            @pl.when(pl.program_id(2) == pl.num_programs(2) - 1)
            def _():
                o_ref[...] = gelu(acc_ref[...] + b_ref[...]
                                  + r_ref[...].astype(jnp.float32)
                                  ).astype(o_ref.dtype)

        return kernel

    def kernel(x_ref, w_ref, b_ref, o_ref, acc_ref):
        @pl.when(pl.program_id(2) == 0)
        def _():
            acc_ref[...] = jnp.zeros_like(acc_ref)

        acc_ref[...] += jnp.dot(x_ref[...].astype(w_ref.dtype), w_ref[...],
                                preferred_element_type=jnp.float32)

        @pl.when(pl.program_id(2) == pl.num_programs(2) - 1)
        def _():
            o_ref[...] = gelu(acc_ref[...] + b_ref[...]).astype(o_ref.dtype)

    return kernel


# ----------------------------------------------------------------------------- #
# Parameter prep + tiling heuristics
# ----------------------------------------------------------------------------- #

def prepare_params(w1, b1, w2, b2, *, dtype):
    """Transpose (out,in)->(in,out), cast weights, keep f32 biases, pad to Dp."""
    d = w1.shape[0]
    d_pad = _round_up(d, _LANE)

    def prep_w(w):
        wt = jnp.asarray(w, dtype).T  # (in, out)
        return jnp.pad(wt, ((0, d_pad - d), (0, d_pad - d)))

    def prep_b(b):
        bb = jnp.asarray(b, jnp.float32).reshape(1, d)  # biases stay f32
        return jnp.pad(bb, ((0, 0), (0, d_pad - d)))

    return prep_w(w1), prep_b(b1), prep_w(w2), prep_b(b2)


def _per_row_bytes(d_pad, itemsize):
    # x + out tiles double-buffered, plus f32 intermediates (h, y, f32-x).
    return 2 * 2 * d_pad * itemsize + 3 * d_pad * 4


def _choose_tile_n(n, d_pad, itemsize, act_budget):
    """Biggest legal row tile that fits the activation-side VMEM budget."""
    per_row = _per_row_bytes(d_pad, itemsize)
    max_rows = max(act_budget // per_row, _SUBLANE)
    if max_rows >= 256:
        max_rows = (max_rows // 256) * 256          # feed the 256-wide MXU
    else:
        max_rows = max((max_rows // _SUBLANE) * _SUBLANE, _SUBLANE)
    n_aligned = max(_round_up(n, _SUBLANE), _SUBLANE)
    if n_aligned <= max_rows:
        # A single tile would cover all rows -> grid (1,). Split into >=2 steps
        # when N is big enough so v7x's 2nd TensorCore gets work and x/out DMA
        # overlaps compute on every generation.
        if n_aligned >= 2 * 256:
            half = _round_up(_ceil_div(n_aligned, 2), 256)
            return min(half, max_rows)
        return n_aligned
    return max_rows


def _choose_kn_tile(d_pad):
    for t in (512, 256, 128):
        if d_pad % t == 0 and d_pad // t >= 2:
            return t
    return _LANE  # d_pad is always lane-padded


# ----------------------------------------------------------------------------- #
# pallas_call wrappers
# ----------------------------------------------------------------------------- #

def _resident_call(x_p, params, tile_n, n_pad, d_pad, approximate, vmem_limit,
                   single_buffer_consts):
    w1_p, b1_p, w2_p, b2_p = params
    itemsize = jnp.dtype(x_p.dtype).itemsize
    w_itemsize = jnp.dtype(w1_p.dtype).itemsize

    const_kw = ({"pipeline_mode": pl.Buffered(1)} if single_buffer_consts else {})
    w_spec = pl.BlockSpec((d_pad, d_pad), lambda i: (0, 0), **const_kw)
    b_spec = pl.BlockSpec((1, d_pad), lambda i: (0, 0), **const_kw)

    cost = pl.CostEstimate(
        flops=int(4 * n_pad * d_pad * d_pad + 20 * n_pad * d_pad),
        transcendentals=int(2 * n_pad * d_pad),
        bytes_accessed=int(2 * n_pad * d_pad * itemsize
                           + 2 * d_pad * d_pad * w_itemsize + 2 * d_pad * 4),
    )

    return pl.pallas_call(
        _make_resident_kernel(approximate),
        out_shape=jax.ShapeDtypeStruct((n_pad, d_pad), x_p.dtype),
        grid_spec=pltpu.PrefetchScalarGridSpec(
            num_scalar_prefetch=0,
            grid=(n_pad // tile_n,),
            in_specs=[
                pl.BlockSpec((tile_n, d_pad), lambda i: (i, 0)),  # x tile
                w_spec,   # W1^T (VMEM-resident)
                b_spec,   # b1 (f32)
                w_spec,   # W2^T (VMEM-resident)
                b_spec,   # b2 (f32)
            ],
            out_specs=pl.BlockSpec((tile_n, d_pad), lambda i: (i, 0)),
        ),
        compiler_params=pltpu.CompilerParams(
            dimension_semantics=("parallel",),
            vmem_limit_bytes=int(vmem_limit),
        ),
        cost_estimate=cost,
    )(x_p, w1_p, b1_p, w2_p, b2_p)


def _stream_matmul(x_p, w_p, b_p, r_p, out_dtype, tm, tkn, approximate,
                   vmem_limit):
    """One K-tiled matmul pass: out = gelu(x @ w + b [+ r])."""
    n_pad = x_p.shape[0]
    d_pad = w_p.shape[1]
    grid = (n_pad // tm, d_pad // tkn, d_pad // tkn)
    with_residual = r_p is not None

    in_specs = [
        pl.BlockSpec((tm, tkn), lambda i, j, k: (i, k)),     # x
        pl.BlockSpec((tkn, tkn), lambda i, j, k: (k, j)),    # W^T
        pl.BlockSpec((1, tkn), lambda i, j, k: (0, j)),      # bias (f32)
    ]
    args = [x_p, w_p, b_p]
    if with_residual:
        in_specs.append(pl.BlockSpec((tm, tkn), lambda i, j, k: (i, j)))
        args.append(r_p)

    itemsize = jnp.dtype(x_p.dtype).itemsize
    w_itemsize = jnp.dtype(w_p.dtype).itemsize
    cost = pl.CostEstimate(
        flops=int(2 * n_pad * d_pad * d_pad + 10 * n_pad * d_pad),
        transcendentals=int(n_pad * d_pad),
        bytes_accessed=int(n_pad * d_pad * (itemsize + jnp.dtype(out_dtype).itemsize)
                           + d_pad * d_pad * w_itemsize),
    )

    return pl.pallas_call(
        _make_stream_kernel(approximate, with_residual),
        out_shape=jax.ShapeDtypeStruct((n_pad, d_pad), out_dtype),
        grid_spec=pltpu.PrefetchScalarGridSpec(
            num_scalar_prefetch=0,
            grid=grid,
            in_specs=in_specs,
            out_specs=pl.BlockSpec((tm, tkn), lambda i, j, k: (i, j)),
            scratch_shapes=[pltpu.VMEM((tm, tkn), jnp.float32)],
        ),
        compiler_params=pltpu.CompilerParams(
            dimension_semantics=("parallel", "parallel", "arbitrary"),
            vmem_limit_bytes=int(vmem_limit),
        ),
        cost_estimate=cost,
    )(*args)


# ----------------------------------------------------------------------------- #
# Public API
# ----------------------------------------------------------------------------- #

def resblock_apply(x, prepared, *, tile_n=None, approximate_gelu=False,
                   force_streaming=False):
    """Apply SimplifiedResBlock with pre-prepared (transposed, padded) params."""
    w1_p, b1_p, w2_p, b2_p = prepared
    d_pad = w1_p.shape[0]
    orig_shape = x.shape
    d = orig_shape[-1]
    x2 = x.reshape(-1, d)
    n = x2.shape[0]
    itemsize = jnp.dtype(x2.dtype).itemsize
    w_itemsize = jnp.dtype(w1_p.dtype).itemsize

    budget = _vmem_budget_bytes()
    single_buffer_consts = _buffered_single_ok()
    weight_bufs = 1 if single_buffer_consts else 2
    # Resident-weight fixed footprint: both weights + both (f32) biases.
    fixed = weight_bufs * (2 * d_pad * d_pad * w_itemsize + 2 * d_pad * 4)
    per_row = _per_row_bytes(d_pad, itemsize)

    use_resident = (not force_streaming) and (fixed + _SUBLANE * per_row) <= budget

    if use_resident:
        if tile_n is None:
            tile_n = _choose_tile_n(n, d_pad, itemsize, budget - fixed)
        tile_n = max(_round_up(tile_n, _SUBLANE), _SUBLANE)
        n_pad = _round_up(max(n, 1), tile_n)

        x_p = x2
        if n_pad != n or d_pad != d:
            x_p = jnp.pad(x2, ((0, n_pad - n), (0, d_pad - d)))

        # Budget includes weights, biases, x/out double buffers AND f32 intermediates.
        vmem_need = fixed + tile_n * per_row
        vmem_limit = min(max(vmem_need + (4 << 20), 32 << 20), budget)

        out = _resident_call(x_p, prepared, tile_n, n_pad, d_pad,
                             approximate_gelu, vmem_limit, single_buffer_consts)
    else:
        # Large-D / forced fallback: weights streamed, K-tiled, f32 accumulator.
        tkn = _choose_kn_tile(d_pad)
        tm = 256 if n >= 256 else max(_round_up(max(n, 1), _SUBLANE), _SUBLANE)
        n_pad = _round_up(max(n, 1), tm)

        x_p = x2
        if n_pad != n or d_pad != d:
            x_p = jnp.pad(x2, ((0, n_pad - n), (0, d_pad - d)))

        vmem_limit = budget
        # Pass 1: h = gelu(x @ W1^T + b1)   (stored in the MXU/param dtype)
        h = _stream_matmul(x_p, w1_p, b1_p, None, w1_p.dtype, tm, tkn,
                           approximate_gelu, vmem_limit)
        # Pass 2: out = gelu(x + h @ W2^T + b2)
        out = _stream_matmul(h, w2_p, b2_p, x_p, x2.dtype, tm, tkn,
                             approximate_gelu, vmem_limit)

    if out.shape[0] != n or out.shape[1] != d:
        out = out[:n, :d]
    return out.reshape(orig_shape)


def simplified_res_block(x, w1, b1, w2, b2, *, tile_n=None, param_dtype=None,
                         approximate_gelu=False, force_streaming=False):
    """x: (..., D). w1/w2: (D, D) PyTorch (out, in) layout. b1/b2: (D,).

    param_dtype=None -> bf16 MXU path for f32 activations (f32 accumulation,
    GELU/residual in f32). Pass param_dtype=jnp.float32 and
    approximate_gelu=False for bit-parity with the f32 PyTorch module.
    """
    if param_dtype is None:
        param_dtype = jnp.bfloat16 if x.dtype == jnp.float32 else x.dtype
    prepared = prepare_params(w1, b1, w2, b2, dtype=param_dtype)
    return resblock_apply(x, prepared, tile_n=tile_n,
                          approximate_gelu=approximate_gelu,
                          force_streaming=force_streaming)


def _reference(x, w1, b1, w2, b2):
    h = x @ w1.T + b1
    h = _gelu_exact(h)
    y = h @ w2.T + b2
    return _gelu_exact(x + y)


if __name__ == "__main__":
    key = jax.random.PRNGKey(0)
    B, S, D = 2, 8, 32   # batch=2, seq=8, hidden(dim)=32

    keys = jax.random.split(key, 10)
    k_x, k_w1, k_b1, k_w2, k_b2, k_x2, k_x3, k_w3, k_b3, k_w4 = keys
    x = jax.random.normal(k_x, (B, S, D), dtype=jnp.float32)

    # nn.Linear-style init: U(-1/sqrt(dim), 1/sqrt(dim)).
    bound = 1.0 / math.sqrt(D)
    w1 = jax.random.uniform(k_w1, (D, D), jnp.float32, -bound, bound)  # (out, in)
    b1 = jax.random.uniform(k_b1, (D,), jnp.float32, -bound, bound)
    w2 = jax.random.uniform(k_w2, (D, D), jnp.float32, -bound, bound)  # (out, in)
    b2 = jax.random.uniform(k_b2, (D,), jnp.float32, -bound, bound)

    ref = _reference(x, w1, b1, w2, b2)

    # 1) Exact-parity path: f32 MXU + erf GELU (matches PyTorch nn.GELU()).
    out_exact = jax.block_until_ready(
        simplified_res_block(x, w1, b1, w2, b2, param_dtype=jnp.float32))
    assert out_exact.shape == x.shape and out_exact.dtype == x.dtype
    assert jnp.allclose(out_exact, ref, atol=1e-5, rtol=1e-5)

    # 2) Default fast path: bf16 MXU with f32 accumulation for f32 activations.
    out_fast = jax.block_until_ready(simplified_res_block(x, w1, b1, w2, b2))
    assert jnp.allclose(out_fast, ref, atol=5e-2, rtol=5e-2)

    # 3) tanh-GELU (EUP) path.
    out_tanh = jax.block_until_ready(
        simplified_res_block(x, w1, b1, w2, b2, param_dtype=jnp.float32,
                             approximate_gelu=True))
    assert jnp.allclose(out_tanh, ref, atol=3e-2, rtol=3e-2)

    # 4) Ragged token count (exercises the N-padding path).
    x_odd = jax.random.normal(k_x2, (3, 5, D), dtype=jnp.float32)
    out_odd = jax.block_until_ready(
        simplified_res_block(x_odd, w1, b1, w2, b2, param_dtype=jnp.float32))
    assert jnp.allclose(out_odd, _reference(x_odd, w1, b1, w2, b2),
                        atol=1e-5, rtol=1e-5)

    # 5) K-tiled streaming fallback (auto-selected at large D; forced here at a
    #    small, fast-to-compile size to exercise the path).
    D2 = 256
    bound2 = 1.0 / math.sqrt(D2)
    xs = jax.random.normal(k_x3, (B, S, D2), dtype=jnp.float32)
    w3 = jax.random.uniform(k_w3, (D2, D2), jnp.float32, -bound2, bound2)
    b3 = jax.random.uniform(k_b3, (D2,), jnp.float32, -bound2, bound2)
    w4 = jax.random.uniform(k_w4, (D2, D2), jnp.float32, -bound2, bound2)
    b4 = jnp.zeros((D2,), jnp.float32)
    out_stream = jax.block_until_ready(
        simplified_res_block(xs, w3, b3, w4, b4, param_dtype=jnp.float32,
                             force_streaming=True))
    assert jnp.allclose(out_stream, _reference(xs, w3, b3, w4, b4),
                        atol=1e-4, rtol=1e-4)

    print("KERNEL_OK")
</pallas_src>

<mosaic_0001>
module attributes {stable_mosaic.version = 11 : i64} {
  func.func @kernel(%arg0: i32, %arg1: memref<16x128xf32, #tpu.memory_space<vmem>>, %arg2: memref<128x128xf32, #tpu.memory_space<vmem>>, %arg3: memref<1x128xf32, #tpu.memory_space<vmem>>, %arg4: memref<128x128xf32, #tpu.memory_space<vmem>>, %arg5: memref<1x128xf32, #tpu.memory_space<vmem>>, %arg6: memref<16x128xf32, #tpu.memory_space<vmem>>) attributes {dimension_semantics = [#tpu.dimension_semantics<parallel>], iteration_bounds = array<i64: 1>, scalar_prefetch = 0 : i64, scratch_operands = 0 : i64, tpu.core_type = #tpu.core_type<tc>, window_params = [{transform_indices = @transform_0, window_bounds = array<i64: 16, 128>}, {pipeline_mode = #tpu.pipeline_mode<synchronous>, transform_indices = @transform_1, window_bounds = array<i64: 128, 128>}, {pipeline_mode = #tpu.pipeline_mode<synchronous>, transform_indices = @transform_2, window_bounds = array<i64: 1, 128>}, {pipeline_mode = #tpu.pipeline_mode<synchronous>, transform_indices = @transform_3, window_bounds = array<i64: 128, 128>}, {pipeline_mode = #tpu.pipeline_mode<synchronous>, transform_indices = @transform_4, window_bounds = array<i64: 1, 128>}, {transform_indices = @transform_5, window_bounds = array<i64: 16, 128>}]} {
    %c0 = arith.constant 0 : index
    %c0_0 = arith.constant 0 : index
    %0 = vector.load %arg1[%c0, %c0_0] : memref<16x128xf32, #tpu.memory_space<vmem>>, vector<16x128xf32>
    %c0_1 = arith.constant 0 : index
    %c0_2 = arith.constant 0 : index
    %1 = vector.load %arg2[%c0_1, %c0_2] : memref<128x128xf32, #tpu.memory_space<vmem>>, vector<128x128xf32>
    %cst = arith.constant dense<0.000000e+00> : vector<16x128xf32>
    %2 = tpu.matmul %0, %1, %cst {dimension_numbers = #tpu.dot_dimension_numbers<[1], [0], [0], [1], [0, 0, 1, 1], [], []>} : vector<16x128xf32>, vector<128x128xf32>, vector<16x128xf32> -> vector<16x128xf32>
    %c0_3 = arith.constant 0 : index
    %c0_4 = arith.constant 0 : index
    %3 = vector.load %arg3[%c0_3, %c0_4] : memref<1x128xf32, #tpu.memory_space<vmem>>, vector<1x128xf32>
    %4 = vector.broadcast %3 : vector<1x128xf32> to vector<16x128xf32>
    %5 = arith.addf %2, %4 : vector<16x128xf32>
    %cst_5 = arith.constant 5.000000e-01 : f32
    %6 = vector.broadcast %cst_5 : f32 to vector<16x128xf32>
    %7 = arith.mulf %6, %5 : vector<16x128xf32>
    %cst_6 = arith.constant 0.707106769 : f32
    %8 = vector.broadcast %cst_6 : f32 to vector<16x128xf32>
    %9 = arith.mulf %5, %8 : vector<16x128xf32>
    %10 = math.erf %9 : vector<16x128xf32>
    %cst_7 = arith.constant 1.000000e+00 : f32
    %11 = vector.broadcast %cst_7 : f32 to vector<16x128xf32>
    %12 = arith.addf %11, %10 : vector<16x128xf32>
    %13 = arith.mulf %7, %12 : vector<16x128xf32>
    %c0_8 = arith.constant 0 : index
    %c0_9 = arith.constant 0 : index
    %14 = vector.load %arg4[%c0_8, %c0_9] : memref<128x128xf32, #tpu.memory_space<vmem>>, vector<128x128xf32>
    %cst_10 = arith.constant dense<0.000000e+00> : vector<16x128xf32>
    %15 = tpu.matmul %13, %14, %cst_10 {dimension_numbers = #tpu.dot_dimension_numbers<[1], [0], [0], [1], [0, 0, 1, 1], [], []>} : vector<16x128xf32>, vector<128x128xf32>, vector<16x128xf32> -> vector<16x128xf32>
    %16 = arith.addf %0, %15 : vector<16x128xf32>
    %c0_11 = arith.constant 0 : index
    %c0_12 = arith.constant 0 : index
    %17 = vector.load %arg5[%c0_11, %c0_12] : memref<1x128xf32, #tpu.memory_space<vmem>>, vector<1x128xf32>
    %18 = vector.broadcast %17 : vector<1x128xf32> to vector<16x128xf32>
    %19 = arith.addf %16, %18 : vector<16x128xf32>
    %cst_13 = arith.constant 5.000000e-01 : f32
    %20 = vector.broadcast %cst_13 : f32 to vector<16x128xf32>
    %21 = arith.mulf %20, %19 : vector<16x128xf32>
    %cst_14 = arith.constant 0.707106769 : f32
    %22 = vector.broadcast %cst_14 : f32 to vector<16x128xf32>
    %23 = arith.mulf %19, %22 : vector<16x128xf32>
    %24 = math.erf %23 : vector<16x128xf32>
    %cst_15 = arith.constant 1.000000e+00 : f32
    %25 = vector.broadcast %cst_15 : f32 to vector<16x128xf32>
    %26 = arith.addf %25, %24 : vector<16x128xf32>
    %27 = arith.mulf %21, %26 : vector<16x128xf32>
    %c0_16 = arith.constant 0 : index
    %c0_17 = arith.constant 0 : index
    %28 = vector.load %arg6[%c0_16, %c0_17] : memref<16x128xf32, #tpu.memory_space<vmem>>, vector<16x128xf32>
    tpu.vector_store %arg6[%c0_16, %c0_17], %27 {strides = array<i32>} : memref<16x128xf32, #tpu.memory_space<vmem>>, vector<16x128xf32>,
    return
  }
  func.func @transform_0(%arg0: i32) -> (i32, i32) {
    %c0_i32 = arith.constant 0 : i32
    %c0_i32_0 = arith.constant 0 : i32
    return %arg0, %c0_i32 : i32, i32
  }
  func.func @transform_1(%arg0: i32) -> (i32, i32) {
    %c0_i32 = arith.constant 0 : i32
    %c0_i32_0 = arith.constant 0 : i32
    %c0_i32_1 = arith.constant 0 : i32
    return %c0_i32, %c0_i32_0 : i32, i32
  }
  func.func @transform_2(%arg0: i32) -> (i32, i32) {
    %c0_i32 = arith.constant 0 : i32
    %c0_i32_0 = arith.constant 0 : i32
    %c0_i32_1 = arith.constant 0 : i32
    return %c0_i32, %c0_i32_0 : i32, i32
  }
  func.func @transform_3(%arg0: i32) -> (i32, i32) {
    %c0_i32 = arith.constant 0 : i32
    %c0_i32_0 = arith.constant 0 : i32
    %c0_i32_1 = arith.constant 0 : i32
    return %c0_i32, %c0_i32_0 : i32, i32
  }
  func.func @transform_4(%arg0: i32) -> (i32, i32) {
    %c0_i32 = arith.constant 0 : i32
    %c0_i32_0 = arith.constant 0 : i32
    %c0_i32_1 = arith.constant 0 : i32
    return %c0_i32, %c0_i32_0 : i32, i32
  }
  func.func @transform_5(%arg0: i32) -> (i32, i32) {
    %c0_i32 = arith.constant 0 : i32
    %c0_i32_0 = arith.constant 0 : i32
    return %arg0, %c0_i32 : i32, i32
  }
}

</mosaic_0001>

<llo_original>
// kernel: tpu_custom_call.1
$region0: #{tpu_custom_call.1}
  #allocation0 [shape = 'u32[]', space=smem, size = 0x4, offset = 0x4, fixed_abs, tag = 'smem constant byte address 0x4 - core index']
  #allocation1 [shape = 'u32[144,128]{1,0:T(1,128)}', space=vmem, size = 0x12000, scoped, tag = 'internal scratch']
  %s0 = inlined_call_operand.hbm [shape: f32[16,128], index: 0, kind: input, shape index: {}]
  %s1 = inlined_call_operand.hbm [shape: f32[128,128], index: 1, kind: input, shape index: {}]
  %s2 = inlined_call_operand.vmem [shape: f32[1,128], index: 2, kind: input, shape index: {}]
  %s3 = inlined_call_operand.hbm [shape: f32[128,128], index: 3, kind: input, shape index: {}]
  %s4 = inlined_call_operand.vmem [shape: f32[1,128], index: 4, kind: input, shape index: {}]
  %s5 = inlined_call_operand.hbm [shape: f32[16,128], index: 5, kind: output, shape index: {}]
  %s6 = sld [smem:[#allocation0]]
  $region42: #{tpu_custom_call.1} parent=0
    _
  %s8 = ssub.s32 1, %s6
  %s9 = scalar_select 0, %s8, %s6
  $region1: #{tpu_custom_call.1} parent=0
    #allocation2 [shape = 'u8[8192]{0}', space=vmem, size = 0x2000, scoped, tag = 'input window, operand 0, single buffered']
    #allocation3 [shape = 's32[1]{0}', space=sflag, size = 0x4, scoped, tag = 'scoped memory for tpu_custom_call.1']
    #allocation4 [shape = 's32[1]{0}', space=sflag, size = 0x4, scoped, tag = 'scoped memory for tpu_custom_call.1']
    #allocation5 [shape = 'u8[65536]{0}', space=vmem, size = 0x10000, scoped, tag = 'input window, operand 1, single buffered']
    #allocation6 [shape = 's32[1]{0}', space=sflag, size = 0x4, scoped, tag = 'scoped memory for tpu_custom_call.1']
    #allocation7 [shape = 'u8[65536]{0}', space=vmem, size = 0x10000, scoped, tag = 'input window, operand 3, single buffered']
    #allocation8 [shape = 'u8[8192]{0}', space=vmem, size = 0x2000, scoped, tag = 'output window, operand 0, single buffered']
    %10 = vsyncpa [#allocation3], 0
    %11 = vsyncpa [#allocation6], 0
    %12 = vsyncpa [#allocation4], 0
    // Predicated region
    $region2: #{tpu_custom_call.1} parent=1 // pred_check
      _
    $region3: #{tpu_custom_call.1} parent=1 // pred_check_branch
      %14 = sbr.rel (0) target = $region5
    $region4: #{tpu_custom_call.1} parent=1 // pred_region
      %s16 = ssub.s32 256, 256
      %17 = vsyncadd [#allocation3], %s16
      %s18 = sshll.u32 [#allocation2], 4
      %s19 = int_to_ptr.vmem [resolvable:$true] %s18
      %24 = dma.hbm_to_vmem [thread:$0]  %s0, 256, %s19, [#allocation3], 128, 128, 8
    $region5: #{tpu_custom_call.1} parent=1 // pred_fallthru
      _
    // Predicated region
    $region6: #{tpu_custom_call.1} parent=1 // pred_check
      _
    $region7: #{tpu_custom_call.1} parent=1 // pred_check_branch
      %26 = sbr.rel (0) target = $region9
    $region8: #{tpu_custom_call.1} parent=1 // pred_region
      %s28 = ssub.s32 2048, 2048
      %29 = vsyncadd [#allocation6], %s28
      %s30 = sshll.u32 [#allocation5], 4
      %s31 = int_to_ptr.vmem [resolvable:$true] %s30
      %36 = dma.hbm_to_vmem [thread:$0]  %s1, 2048, %s31, [#allocation6], 128, 128, 8
    $region9: #{tpu_custom_call.1} parent=1 // pred_fallthru
      _
    // Predicated region
    $region10: #{tpu_custom_call.1} parent=1 // pred_check
      _
    $region11: #{tpu_custom_call.1} parent=1 // pred_check_branch
      %38 = sbr.rel (0) target = $region13
    $region12: #{tpu_custom_call.1} parent=1 // pred_region
      _
    $region13: #{tpu_custom_call.1} parent=1 // pred_fallthru
      _
    // Predicated region
    $region14: #{tpu_custom_call.1} parent=1 // pred_check
      _
    $region15: #{tpu_custom_call.1} parent=1 // pred_check_branch
      %40 = sbr.rel (0) target = $region17
    $region16: #{tpu_custom_call.1} parent=1 // pred_region
      %s42 = ssub.s32 2048, 2048
      %43 = vsyncadd [#allocation6], %s42
      %s44 = sshll.u32 [#allocation7], 4
      %s45 = int_to_ptr.vmem [resolvable:$true] %s44
      %50 = dma.hbm_to_vmem [thread:$0]  %s3, 2048, %s45, [#allocation6], 128, 128, 8
    $region17: #{tpu_custom_call.1} parent=1 // pred_fallthru
      _
    // Predicated region
    $region18: #{tpu_custom_call.1} parent=1 // pred_check
      _
    $region19: #{tpu_custom_call.1} parent=1 // pred_check_branch
      %52 = sbr.rel (0) target = $region21
    $region20: #{tpu_custom_call.1} parent=1 // pred_region
      _
    $region21: #{tpu_custom_call.1} parent=1 // pred_fallthru
      _
    // Predicated region
    $region22: #{tpu_custom_call.1} parent=1 // pred_check
      _
    $region23: #{tpu_custom_call.1} parent=1 // pred_check_branch
      %54 = sbr.rel (0) target = $region25
    $region24: #{tpu_custom_call.1} parent=1 // pred_region
      %55 = dma.done [#allocation3], 256
    $region25: #{tpu_custom_call.1} parent=1 // pred_fallthru
      _
    // Predicated region
    $region26: #{tpu_custom_call.1} parent=1 // pred_check
      _
    $region27: #{tpu_custom_call.1} parent=1 // pred_check_branch
      %57 = sbr.rel (0) target = $region29
    $region28: #{tpu_custom_call.1} parent=1 // pred_region
      %58 = dma.done [#allocation6], 2048
    $region29: #{tpu_custom_call.1} parent=1 // pred_fallthru
      _
    // Predicated region
    $region30: #{tpu_custom_call.1} parent=1 // pred_check
      _
    $region31: #{tpu_custom_call.1} parent=1 // pred_check_branch
      %60 = sbr.rel (0) target = $region33
    $region32: #{tpu_custom_call.1} parent=1 // pred_region
      %61 = dma.done [#allocation6], 2048
    $region33: #{tpu_custom_call.1} parent=1 // pred_fallthru
      _
    %v62 = vld [vmem:[#allocation2] sm:$0xff]
    %v63 = vld [vmem:[#allocation2 + $0x8] sm:$0xff]
    %v64 = vld [vmem:[#allocation5] sm:$0xff]
    %v65 = vld [vmem:[#allocation5 + $0x8] sm:$0xff]
    %v66 = vld [vmem:[#allocation5 + $0x10] sm:$0xff]
    %v67 = vld [vmem:[#allocation5 + $0x18] sm:$0xff]
    %v68 = vld [vmem:[#allocation5 + $0x20] sm:$0xff]
    %v69 = vld [vmem:[#allocation5 + $0x28] sm:$0xff]
    %v70 = vld [vmem:[#allocation5 + $0x30] sm:$0xff]
    %v71 = vld [vmem:[#allocation5 + $0x38] sm:$0xff]
    %v72 = vld [vmem:[#allocation5 + $0x40] sm:$0xff]
    %v73 = vld [vmem:[#allocation5 + $0x48] sm:$0xff]
    %v74 = vld [vmem:[#allocation5 + $0x50] sm:$0xff]
    %v75 = vld [vmem:[#allocation5 + $0x58] sm:$0xff]
    %v76 = vld [vmem:[#allocation5 + $0x60] sm:$0xff]
    %v77 = vld [vmem:[#allocation5 + $0x68] sm:$0xff]
    %v78 = vld [vmem:[#allocation5 + $0x70] sm:$0xff]
    %v79 = vld [vmem:[#allocation5 + $0x78] sm:$0xff]
    %v80 = vld [vmem:[%s2] sm:$0x1]
    %v82 = vlaneseq
    %v83 = vshrl.u32 %v82, 7
    %v84 = vsub.s32 0, %v83
    %v85 = vrot.slane %v80, %v84
    %87 = vmatprep.subr.mxu0 0.0
    %88 = vmatpush1.msra.mxu0 %v64
    %89 = vmatprep.subr.mxu0 0.0
    %90 = vmatpush1.msra.mxu0 %v65
    %91 = vmatprep.subr.mxu0 0.0
    %92 = vmatpush1.msra.mxu0 %v66
    %93 = vmatprep.subr.mxu0 0.0
    %94 = vmatpush1.msra.mxu0 %v67
    %95 = vmatprep.subr.mxu0 0.0
    %96 = vmatpush1.msra.mxu0 %v68
    %97 = vmatprep.subr.mxu0 0.0
    %98 = vmatpush1.msra.mxu0 %v69
    %99 = vmatprep.subr.mxu0 0.0
    %100 = vmatpush1.msra.mxu0 %v70
    %101 = vmatprep.subr.mxu0 0.0
    %102 = vmatpush1.msra.mxu0 %v71
    %103 = vmatprep.subr.mxu0 0.0
    %104 = vmatpush1.msra.mxu0 %v72
    %105 = vmatprep.subr.mxu0 0.0
    %106 = vmatpush1.msra.mxu0 %v73
    %107 = vmatprep.subr.mxu0 0.0
    %108 = vmatpush1.msra.mxu0 %v74
    %109 = vmatprep.subr.mxu0 0.0
    %110 = vmatpush1.msra.mxu0 %v75
    %111 = vmatprep.subr.mxu0 0.0
    %112 = vmatpush1.msra.mxu0 %v76
    %113 = vmatprep.subr.mxu0 0.0
    %114 = vmatpush1.msra.mxu0 %v77
    %115 = vmatprep.subr.mxu0 0.0
    %116 = vmatpush1.msra.mxu0 %v78
    %117 = vmatprep.subr.mxu0 0.0
    %118 = vmatpush1.msra.mxu0 %v79
    %119 = vmatprep.subr.mxu0 0.0
    %120 = vmatpush1.msra.mxu0 0.0
    %121 = vmatprep.subr.mxu0 0.0
    %122 = vmatpush1.msra.mxu0 0.0
    %123 = vmatprep.subr.mxu0 0.0
    %124 = vmatpush1.msra.mxu0 0.0
    %125 = vmatprep.subr.mxu0 0.0
    %126 = vmatpush1.msra.mxu0 0.0
    %127 = vmatprep.subr.mxu0 0.0
    %128 = vmatpush1.msra.mxu0 0.0
    %129 = vmatprep.subr.mxu0 0.0
    %130 = vmatpush1.msra.mxu0 0.0
    %131 = vmatprep.subr.mxu0 0.0
    %132 = vmatpush1.msra.mxu0 0.0
    %133 = vmatprep.subr.mxu0 0.0
    %134 = vmatpush1.msra.mxu0 0.0
    %135 = vmatprep.subr.mxu0 0.0
    %136 = vmatpush1.msra.mxu0 0.0
    %137 = vmatprep.subr.mxu0 0.0
    %138 = vmatpush1.msra.mxu0 0.0
    %139 = vmatprep.subr.mxu0 0.0
    %140 = vmatpush1.msra.mxu0 0.0
    %141 = vmatprep.subr.mxu0 0.0
    %142 = vmatpush1.msra.mxu0 0.0
    %143 = vmatprep.subr.mxu0 0.0
    %144 = vmatpush1.msra.mxu0 0.0
    %145 = vmatprep.subr.mxu0 0.0
    %146 = vmatpush1.msra.mxu0 0.0
    %147 = vmatprep.subr.mxu0 0.0
    %148 = vmatpush1.msra.mxu0 0.0
    %149 = vmatprep.subr.mxu0 0.0
    %150 = vmatpush1.msra.mxu0 0.0
    %151 = vmatprep.mubr.f32.mxu0 0.0
    %152 = vmatmul.mubr.f32.gmra.mrb[0].mxu0 %v62
    %v153 = vpop.f32.mrb[0].mxu0
    %v154 = vadd.f32 %v85, %v153
    %v155 = vpop.f32.mrb[0].mxu0
    %156 = vmatprep.mubr.f32.mxu0 0.0
    %157 = vmatmul.mubr.f32.gmra.mrb[0].mxu0 %v63
    %v158 = vpop.f32.mrb[0].mxu0
    %v159 = vadd.f32 %v85, %v158
    %v160 = vpop.f32.mrb[0].mxu0
    %161 = vdwg.mxu0
    %v162 = vmul.f32 %v154, 0.5
    %v163 = vmul.f32 %v159, 0.5
    %v164 = vmul.f32 %v154, 0.70710677
    %v165 = vmul.f32 %v159, 0.70710677
    %v166 = verf.f32.pop %v164
    %v167 = verf.f32.pop %v165
    %v168 = vadd.f32 %v166, 1.0
    %v169 = vadd.f32 %v167, 1.0
    %v170 = vmul.f32 %v162, %v168
    %v171 = vmul.f32 %v163, %v169
    %v172 = vld [vmem:[#allocation7] sm:$0xff]
    %v173 = vld [vmem:[#allocation7 + $0x8] sm:$0xff]
    %v174 = vld [vmem:[#allocation7 + $0x10] sm:$0xff]
    %v175 = vld [vmem:[#allocation7 + $0x18] sm:$0xff]
    %v176 = vld [vmem:[#allocation7 + $0x20] sm:$0xff]
    %v177 = vld [vmem:[#allocation7 + $0x28] sm:$0xff]
    %v178 = vld [vmem:[#allocation7 + $0x30] sm:$0xff]
    %v179 = vld [vmem:[#allocation7 + $0x38] sm:$0xff]
    %v180 = vld [vmem:[#allocation7 + $0x40] sm:$0xff]
    %v181 = vld [vmem:[#allocation7 + $0x48] sm:$0xff]
    %v182 = vld [vmem:[#allocation7 + $0x50] sm:$0xff]
    %v183 = vld [vmem:[#allocation7 + $0x58] sm:$0xff]
    %v184 = vld [vmem:[#allocation7 + $0x60] sm:$0xff]
    %v185 = vld [vmem:[#allocation7 + $0x68] sm:$0xff]
    %v186 = vld [vmem:[#allocation7 + $0x70] sm:$0xff]
    %v187 = vld [vmem:[#allocation7 + $0x78] sm:$0xff]
    %188 = vmatprep.subr.mxu0 0.0
    %189 = vmatpush1.msra.mxu0 %v172
    %190 = vmatprep.subr.mxu0 0.0
    %191 = vmatpush1.msra.mxu0 %v173
    %192 = vmatprep.subr.mxu0 0.0
    %193 = vmatpush1.msra.mxu0 %v174
    %194 = vmatprep.subr.mxu0 0.0
    %195 = vmatpush1.msra.mxu0 %v175
    %196 = vmatprep.subr.mxu0 0.0
    %197 = vmatpush1.msra.mxu0 %v176
    %198 = vmatprep.subr.mxu0 0.0
    %199 = vmatpush1.msra.mxu0 %v177
    %200 = vmatprep.subr.mxu0 0.0
    %201 = vmatpush1.msra.mxu0 %v178
    %202 = vmatprep.subr.mxu0 0.0
    %203 = vmatpush1.msra.mxu0 %v179
    %204 = vmatprep.subr.mxu0 0.0
    %205 = vmatpush1.msra.mxu0 %v180
    %206 = vmatprep.subr.mxu0 0.0
    %207 = vmatpush1.msra.mxu0 %v181
    %208 = vmatprep.subr.mxu0 0.0
    %209 = vmatpush1.msra.mxu0 %v182
    %210 = vmatprep.subr.mxu0 0.0
    %211 = vmatpush1.msra.mxu0 %v183
    %212 = vmatprep.subr.mxu0 0.0
    %213 = vmatpush1.msra.mxu0 %v184
    %214 = vmatprep.subr.mxu0 0.0
    %215 = vmatpush1.msra.mxu0 %v185
    %216 = vmatprep.subr.mxu0 0.0
    %217 = vmatpush1.msra.mxu0 %v186
    %218 = vmatprep.subr.mxu0 0.0
    %219 = vmatpush1.msra.mxu0 %v187
    %220 = vmatprep.subr.mxu0 0.0
    %221 = vmatpush1.msra.mxu0 0.0
    %222 = vmatprep.subr.mxu0 0.0
    %223 = vmatpush1.msra.mxu0 0.0
    %224 = vmatprep.subr.mxu0 0.0
    %225 = vmatpush1.msra.mxu0 0.0
    %226 = vmatprep.subr.mxu0 0.0
    %227 = vmatpush1.msra.mxu0 0.0
    %228 = vmatprep.subr.mxu0 0.0
    %229 = vmatpush1.msra.mxu0 0.0
    %230 = vmatprep.subr.mxu0 0.0
    %231 = vmatpush1.msra.mxu0 0.0
    %232 = vmatprep.subr.mxu0 0.0
    %233 = vmatpush1.msra.mxu0 0.0
    %234 = vmatprep.subr.mxu0 0.0
    %235 = vmatpush1.msra.mxu0 0.0
    %236 = vmatprep.subr.mxu0 0.0
    %237 = vmatpush1.msra.mxu0 0.0
    %238 = vmatprep.subr.mxu0 0.0
    %239 = vmatpush1.msra.mxu0 0.0
    %240 = vmatprep.subr.mxu0 0.0
    %241 = vmatpush1.msra.mxu0 0.0
    %242 = vmatprep.subr.mxu0 0.0
    %243 = vmatpush1.msra.mxu0 0.0
    %244 = vmatprep.subr.mxu0 0.0
    %245 = vmatpush1.msra.mxu0 0.0
    %246 = vmatprep.subr.mxu0 0.0
    %247 = vmatpush1.msra.mxu0 0.0
    %248 = vmatprep.subr.mxu0 0.0
    %249 = vmatpush1.msra.mxu0 0.0
    %250 = vmatprep.subr.mxu0 0.0
    %251 = vmatpush1.msra.mxu0 0.0
    %252 = vmatprep.mubr.f32.mxu0 0.0
    %253 = vmatmul.mubr.f32.gmra.mrb[0].mxu0 %v170
    %v254 = vpop.f32.mrb[0].mxu0
    %v255 = vadd.f32 0.0, %v254
    %v256 = vpop.f32.mrb[0].mxu0
    %257 = vmatprep.mubr.f32.mxu0 0.0
    %258 = vmatmul.mubr.f32.gmra.mrb[0].mxu0 %v171
    %v259 = vpop.f32.mrb[0].mxu0
    %v260 = vadd.f32 0.0, %v259
    %v261 = vpop.f32.mrb[0].mxu0
    %262 = vdwg.mxu0
    %v263 = vadd.f32 %v62, %v255
    %v264 = vadd.f32 %v63, %v260
    %v265 = vld [vmem:[%s4] sm:$0x1]
    %v267 = vlaneseq
    %v268 = vshrl.u32 %v267, 7
    %v269 = vsub.s32 0, %v268
    %v270 = vrot.slane %v265, %v269
    %v272 = vadd.f32 %v263, %v270
    %v273 = vadd.f32 %v264, %v270
    %v274 = vmul.f32 %v272, 0.5
    %v275 = vmul.f32 %v273, 0.5
    %v276 = vmul.f32 %v272, 0.70710677
    %v277 = vmul.f32 %v273, 0.70710677
    %v278 = verf.f32.pop %v276
    %v279 = verf.f32.pop %v277
    %v280 = vadd.f32 %v278, 1.0
    %v281 = vadd.f32 %v279, 1.0
    %v282 = vmul.f32 %v274, %v280
    %v283 = vmul.f32 %v275, %v281
    %284 = vst [vmem:[#allocation8] sm:$0xff] %v282
    %285 = vst [vmem:[#allocation8 + $0x8] sm:$0xff] %v283
    // Predicated region
    $region34: #{tpu_custom_call.1} parent=1 // pred_check
      _
    $region35: #{tpu_custom_call.1} parent=1 // pred_check_branch
      %287 = sbr.rel (0) target = $region37
    $region36: #{tpu_custom_call.1} parent=1 // pred_region
      %s289 = ssub.s32 256, 256
      %290 = vsyncadd [#allocation4], %s289
      %s291 = sshll.u32 [#allocation8], 4
      %s292 = int_to_ptr.vmem [resolvable:$true] %s291
      %297 = dma.vmem_to_hbm [thread:$0]  %s292, 256, %s5, [#allocation4], 128, 128, 8
    $region37: #{tpu_custom_call.1} parent=1 // pred_fallthru
      _
    // Predicated region
    $region38: #{tpu_custom_call.1} parent=1 // pred_check
      _
    $region39: #{tpu_custom_call.1} parent=1 // pred_check_branch
      %299 = sbr.rel (0) target = $region41
    $region40: #{tpu_custom_call.1} parent=1 // pred_region
      %300 = dma.done [#allocation4], 256
    $region41: #{tpu_custom_call.1} parent=1 // pred_fallthru
      _
    %301 = vsyncpa [#allocation3], 1
    %302 = vsyncpa [#allocation6], 1
    %303 = vsyncpa [#allocation4], 1

</llo_original>
